<compile_context>
chip_gen: v6e
topology: v6e:2x2x1
jax: 0.10.0
libtpu: 0.0.40
codegen_flags: <defaults>
</compile_context>

<pallas_src>
import functools

import jax
import jax.numpy as jnp
from jax.experimental import pallas as pl
from jax.experimental.pallas import tpu as pltpu


def _conv1x1_kernel(x_ref, w_ref, b_ref, o_ref):
    # x_ref: (Nb, C_in, ts)   w_ref: (C_out, C_in)   b_ref: (C_out, 1)
    # o_ref: (Nb, C_out, ts)
    w = w_ref[...]
    b = b_ref[...]
    nb = x_ref.shape[0]

    def one(i):
        acc = jnp.dot(w, x_ref[i], preferred_element_type=jnp.float32)
        o_ref[i] = (acc + b).astype(o_ref.dtype)

    if nb == 1:
        one(0)
    else:
        def body(i, carry):
            one(i)
            return carry

        jax.lax.fori_loop(0, nb, body, 0, unroll=nb <= 8)


def _round_up(x, m):
    return ((x + m - 1) // m) * m


def _choose_blocking(n, hw, c_in, c_out, itemsize, target_bytes):
    """Pick (Nb images per step, ts spatial columns per step).

    ts is a multiple of 128 sized so that in+out bytes per grid step hit
    ~target_bytes; if a whole image fits in one tile, block several images
    per step instead (a (Nb, C_in, HW) slab is contiguous in HBM).
    """
    bytes_per_col = (c_in + c_out) * itemsize
    hw128 = _round_up(hw, 128)
    cols_target = max(128, ((target_bytes // bytes_per_col) // 128) * 128)

    if cols_target >= hw128:
        ts = hw128
        img_bytes = bytes_per_col * hw128
        nb = int(max(1, min(n, target_bytes // max(1, img_bytes))))
        while n % nb != 0:          # keep the batch grid axis exact
            nb -= 1
        return nb, ts
    return 1, cols_target


@functools.partial(jax.jit, static_argnames=("target_bytes",))
def output_layer_conv(x_nchw, weight, bias, *, target_bytes=4 << 20):
    """1x1 conv, matching torch.nn.Conv2d(in_ch, out_ch, kernel_size=1).

    x_nchw : (N, C_in, H, W)
    weight : (C_out, C_in, 1, 1)   (PyTorch layout)
    bias   : (C_out,)
    returns: (N, C_out, H, W)
    """
    N, C_in, H, W = x_nchw.shape
    C_out = weight.shape[0]
    HW = H * W
    itemsize = jnp.dtype(x_nchw.dtype).itemsize

    nb, ts = _choose_blocking(N, HW, C_in, C_out, itemsize, target_bytes)

    # NCHW-native view: each image is a (C_in, H*W) matrix; spatial on lanes.
    # No padding / slicing in the wrapper -- Pallas masks the ragged tail.
    x3 = x_nchw.reshape(N, C_in, HW)
    w_mat = weight.reshape(C_out, C_in)
    b_col = bias.reshape(C_out, 1)

    grid = (N // nb, pl.cdiv(HW, ts))

    cost = pl.CostEstimate(
        flops=2 * N * HW * C_in * C_out,
        transcendentals=0,
        bytes_accessed=itemsize * N * HW * (C_in + C_out)
        + jnp.dtype(weight.dtype).itemsize * (C_out * C_in + C_out),
    )

    # Double-buffered in/out blocks + resident weight/bias + slack; no large
    # fixed floor so we stay well under every generation's scoped default.
    block_bytes = nb * ts * (C_in + C_out) * itemsize
    param_bytes = (C_out * C_in + C_out) * jnp.dtype(weight.dtype).itemsize
    vmem_needed = 2 * block_bytes + 2 * param_bytes
    vmem_limit = int(min(max(vmem_needed + (4 << 20), 8 << 20), 48 << 20))

    out3 = pl.pallas_call(
        _conv1x1_kernel,
        out_shape=jax.ShapeDtypeStruct((N, C_out, HW), x_nchw.dtype),
        grid_spec=pltpu.PrefetchScalarGridSpec(
            num_scalar_prefetch=0,
            grid=grid,
            in_specs=[
                pl.BlockSpec((nb, C_in, ts), lambda n, s: (n, 0, s)),
                pl.BlockSpec((C_out, C_in), lambda n, s: (0, 0)),
                pl.BlockSpec((C_out, 1), lambda n, s: (0, 0)),
            ],
            out_specs=pl.BlockSpec((nb, C_out, ts), lambda n, s: (n, 0, s)),
        ),
        compiler_params=pltpu.CompilerParams(
            dimension_semantics=("parallel", "parallel"),
            vmem_limit_bytes=vmem_limit,
        ),
        cost_estimate=cost,
    )(x3, w_mat, b_col)

    return out3.reshape(N, C_out, H, W)


if __name__ == "__main__":
    # Small shapes consistent with the module: batch=2, in_channels=4,
    # out_channels=2, spatial=16x16.
    N, C_in, C_out, H, W = 2, 4, 2, 16, 16

    key = jax.random.PRNGKey(0)
    kx, kw, kb = jax.random.split(key, 3)

    x = jax.random.normal(kx, (N, C_in, H, W), dtype=jnp.float32)
    # Deterministic parameter init (mimics Conv2d's uniform(-1/sqrt(fan_in), ..)).
    bound = 1.0 / jnp.sqrt(jnp.float32(C_in))
    weight = jax.random.uniform(
        kw, (C_out, C_in, 1, 1), minval=-bound, maxval=bound, dtype=jnp.float32
    )
    bias = jax.random.uniform(
        kb, (C_out,), minval=-bound, maxval=bound, dtype=jnp.float32
    )

    out = output_layer_conv(x, weight, bias)
    jax.block_until_ready(out)

    # Reference check against plain-JAX 1x1 conv semantics.
    ref = (
        jnp.einsum("nchw,oc->nohw", x, weight.reshape(C_out, C_in))
        + bias.reshape(1, C_out, 1, 1)
    )
    assert out.shape == (N, C_out, H, W)
    assert jnp.allclose(out, ref, atol=1e-5, rtol=1e-5)

    print("KERNEL_OK")
</pallas_src>

<mosaic_0001>
module attributes {stable_mosaic.version = 11 : i64} {
  func.func @_conv1x1_kernel(%arg0: i32, %arg1: i32, %arg2: memref<2x4x256xf32, #tpu.memory_space<vmem>>, %arg3: memref<2x4xf32, #tpu.memory_space<vmem>>, %arg4: memref<2x1xf32, #tpu.memory_space<vmem>>, %arg5: memref<2x2x256xf32, #tpu.memory_space<vmem>>) attributes {dimension_semantics = [#tpu.dimension_semantics<parallel>, #tpu.dimension_semantics<parallel>], iteration_bounds = array<i64: 1, 1>, scalar_prefetch = 0 : i64, scratch_operands = 0 : i64, tpu.core_type = #tpu.core_type<tc>, window_params = [{transform_indices = @transform_0, window_bounds = array<i64: 2, 4, 256>}, {pipeline_mode = #tpu.pipeline_mode<synchronous>, transform_indices = @transform_1, window_bounds = array<i64: 2, 4>}, {pipeline_mode = #tpu.pipeline_mode<synchronous>, transform_indices = @transform_2, window_bounds = array<i64: 2, 1>}, {transform_indices = @transform_3, window_bounds = array<i64: 2, 2, 256>}]} {
    %c0 = arith.constant 0 : index
    %c0_0 = arith.constant 0 : index
    %0 = vector.load %arg3[%c0, %c0_0] : memref<2x4xf32, #tpu.memory_space<vmem>>, vector<2x4xf32>
    %c0_1 = arith.constant 0 : index
    %c0_2 = arith.constant 0 : index
    %1 = vector.load %arg4[%c0_1, %c0_2] : memref<2x1xf32, #tpu.memory_space<vmem>>, vector<2x1xf32>
    %c0_i32 = arith.constant 0 : i32
    %2 = arith.index_cast %c0_i32 : i32 to index
    %c0_3 = arith.constant 0 : index
    %c0_4 = arith.constant 0 : index
    %3 = vector.load %arg2[%2, %c0_3, %c0_4] : memref<2x4x256xf32, #tpu.memory_space<vmem>>, vector<1x4x256xf32>
    %4 = vector.shape_cast %3 : vector<1x4x256xf32> to vector<4x256xf32>
    %cst = arith.constant dense<0.000000e+00> : vector<2x256xf32>
    %5 = tpu.matmul %0, %4, %cst {dimension_numbers = #tpu.dot_dimension_numbers<[1], [0], [0], [1], [0, 0, 1, 1], [], []>} : vector<2x4xf32>, vector<4x256xf32>, vector<2x256xf32> -> vector<2x256xf32>
    %6 = vector.broadcast %1 : vector<2x1xf32> to vector<2x256xf32>
    %7 = arith.addf %5, %6 : vector<2x256xf32>
    %8 = arith.index_cast %c0_i32 : i32 to index
    %c0_5 = arith.constant 0 : index
    %c0_6 = arith.constant 0 : index
    %9 = vector.load %arg5[%8, %c0_5, %c0_6] : memref<2x2x256xf32, #tpu.memory_space<vmem>>, vector<1x2x256xf32>
    %10 = vector.shape_cast %9 : vector<1x2x256xf32> to vector<2x256xf32>
    %11 = vector.shape_cast %7 : vector<2x256xf32> to vector<1x2x256xf32>
    tpu.vector_store %arg5[%8, %c0_5, %c0_6], %11 {strides = array<i32>} : memref<2x2x256xf32, #tpu.memory_space<vmem>>, vector<1x2x256xf32>,
    %c1_i32 = arith.constant 1 : i32
    %12 = arith.index_cast %c1_i32 : i32 to index
    %c0_7 = arith.constant 0 : index
    %c0_8 = arith.constant 0 : index
    %13 = vector.load %arg2[%12, %c0_7, %c0_8] : memref<2x4x256xf32, #tpu.memory_space<vmem>>, vector<1x4x256xf32>
    %14 = vector.shape_cast %13 : vector<1x4x256xf32> to vector<4x256xf32>
    %cst_9 = arith.constant dense<0.000000e+00> : vector<2x256xf32>
    %15 = tpu.matmul %0, %14, %cst_9 {dimension_numbers = #tpu.dot_dimension_numbers<[1], [0], [0], [1], [0, 0, 1, 1], [], []>} : vector<2x4xf32>, vector<4x256xf32>, vector<2x256xf32> -> vector<2x256xf32>
    %16 = vector.broadcast %1 : vector<2x1xf32> to vector<2x256xf32>
    %17 = arith.addf %15, %16 : vector<2x256xf32>
    %18 = arith.index_cast %c1_i32 : i32 to index
    %c0_10 = arith.constant 0 : index
    %c0_11 = arith.constant 0 : index
    %19 = vector.load %arg5[%18, %c0_10, %c0_11] : memref<2x2x256xf32, #tpu.memory_space<vmem>>, vector<1x2x256xf32>
    %20 = vector.shape_cast %19 : vector<1x2x256xf32> to vector<2x256xf32>
    %21 = vector.shape_cast %17 : vector<2x256xf32> to vector<1x2x256xf32>
    tpu.vector_store %arg5[%18, %c0_10, %c0_11], %21 {strides = array<i32>} : memref<2x2x256xf32, #tpu.memory_space<vmem>>, vector<1x2x256xf32>,
    %c2_i32 = arith.constant 2 : i32
    return
  }
  func.func @transform_0(%arg0: i32, %arg1: i32) -> (i32, i32, i32) {
    %c0_i32 = arith.constant 0 : i32
    %c0_i32_0 = arith.constant 0 : i32
    return %arg0, %c0_i32, %arg1 : i32, i32, i32
  }
  func.func @transform_1(%arg0: i32, %arg1: i32) -> (i32, i32) {
    %c0_i32 = arith.constant 0 : i32
    %c0_i32_0 = arith.constant 0 : i32
    %c0_i32_1 = arith.constant 0 : i32
    return %c0_i32, %c0_i32_0 : i32, i32
  }
  func.func @transform_2(%arg0: i32, %arg1: i32) -> (i32, i32) {
    %c0_i32 = arith.constant 0 : i32
    %c0_i32_0 = arith.constant 0 : i32
    %c0_i32_1 = arith.constant 0 : i32
    return %c0_i32, %c0_i32_0 : i32, i32
  }
  func.func @transform_3(%arg0: i32, %arg1: i32) -> (i32, i32, i32) {
    %c0_i32 = arith.constant 0 : i32
    %c0_i32_0 = arith.constant 0 : i32
    return %arg0, %c0_i32, %arg1 : i32, i32, i32
  }
}

</mosaic_0001>

<llo_original>
// kernel: output_layer_conv.1
$region0: #{output_layer_conv.1}
  #allocation0 [shape = 'u32[]', space=smem, size = 0x4, offset = 0x4, fixed_abs, tag = 'smem constant byte address 0x4 - core index']
  #allocation1 [shape = 'u32[144,128]{1,0:T(1,128)}', space=vmem, size = 0x12000, scoped, tag = 'internal scratch']
  %s0 = inlined_call_operand.vmem [shape: f32[2,4,256], index: 0, kind: input, shape index: {}]
  %s1 = inlined_call_operand.vmem [shape: f32[2,4], index: 1, kind: input, shape index: {}]
  %s2 = inlined_call_operand.vmem [shape: f32[2,1], index: 2, kind: input, shape index: {}]
  %s3 = inlined_call_operand.vmem [shape: f32[2,2,256], index: 3, kind: output, shape index: {}]
  %s4 = sld [smem:[#allocation0]]
  $region22: #{output_layer_conv.1} parent=0
    _
  %s6 = ssub.s32 1, %s4
  %s7 = scalar_select 0, %s6, %s4
  // Predicated region
  $region2: #{output_layer_conv.1} parent=0 // pred_check
    _
  $region3: #{output_layer_conv.1} parent=0 // pred_check_branch
    %9 = sbr.rel (0) target = $region5
  $region4: #{output_layer_conv.1} parent=0 // pred_region
    _
  $region5: #{output_layer_conv.1} parent=0 // pred_fallthru
    _
  // Predicated region
  $region6: #{output_layer_conv.1} parent=0 // pred_check
    _
  $region7: #{output_layer_conv.1} parent=0 // pred_check_branch
    %11 = sbr.rel (0) target = $region9
  $region8: #{output_layer_conv.1} parent=0 // pred_region
    _
  $region9: #{output_layer_conv.1} parent=0 // pred_fallthru
    _
  // Predicated region
  $region10: #{output_layer_conv.1} parent=0 // pred_check
    _
  $region11: #{output_layer_conv.1} parent=0 // pred_check_branch
    %13 = sbr.rel (0) target = $region13
  $region12: #{output_layer_conv.1} parent=0 // pred_region
    _
  $region13: #{output_layer_conv.1} parent=0 // pred_fallthru
    _
  %v14 = vld [vmem:[%s1] sm:$0x3]
  %v15 = vld [vmem:[%s2] sm:$0x3]
  %v16 = vld [vmem:[%s0] sm:$0xff]
  %18 = vset.pattern.permute.xlu0 0
  %19 = vperm.xlu0 %18, %v15
  %v20 = vpop.permute.xlu0 %19
  %v23 = vcombine.high %v16, %v16
  %vm24 = vcmask 31744
  %v26 = vsel %vm24, %v14, 0
  %vm28 = vcmask 1043456
  %v29 = vsel %vm28, %v16, 0
  %v31 = vsel %vm28, %v23, 0
  %33 = vmatprep.subr.mxu0 0.0
  %34 = vmatpush1.msra.mxu0 0.0
  %35 = vmatprep.subr.mxu0 0.0
  %36 = vmatpush1.msra.mxu0 0.0
  %37 = vmatprep.subr.mxu0 0.0
  %38 = vmatpush1.msra.mxu0 0.0
  %39 = vmatprep.subr.mxu0 0.0
  %40 = vmatpush1.msra.mxu0 0.0
  %41 = vmatprep.subr.mxu0 0.0
  %42 = vmatpush1.msra.mxu0 0.0
  %43 = vmatprep.subr.mxu0 0.0
  %44 = vmatpush1.msra.mxu0 0.0
  %45 = vmatprep.subr.mxu0 0.0
  %46 = vmatpush1.msra.mxu0 0.0
  %47 = vmatprep.subr.mxu0 0.0
  %48 = vmatpush1.msra.mxu0 0.0
  %49 = vmatprep.subr.mxu0 0.0
  %50 = vmatpush1.msra.mxu0 0.0
  %51 = vmatprep.subr.mxu0 0.0
  %52 = vmatpush1.msra.mxu0 0.0
  %53 = vmatprep.subr.mxu0 0.0
  %54 = vmatpush1.msra.mxu0 0.0
  %55 = vmatprep.subr.mxu0 0.0
  %56 = vmatpush1.msra.mxu0 0.0
  %57 = vmatprep.subr.mxu0 0.0
  %58 = vmatpush1.msra.mxu0 0.0
  %59 = vmatprep.subr.mxu0 0.0
  %60 = vmatpush1.msra.mxu0 0.0
  %61 = vmatprep.subr.mxu0 0.0
  %62 = vmatpush1.msra.mxu0 0.0
  %63 = vmatprep.subr.mxu0 %v31
  %64 = vmatpush1.msra.mxu0 %v29
  %65 = vmatprep.subr.mxu0 0.0
  %66 = vmatpush2.msra.mxu0 0.0
  %67 = vmatprep.subr.mxu0 0.0
  %68 = vmatpush2.msra.mxu0 0.0
  %69 = vmatprep.subr.mxu0 0.0
  %70 = vmatpush2.msra.mxu0 0.0
  %71 = vmatprep.subr.mxu0 0.0
  %72 = vmatpush2.msra.mxu0 0.0
  %73 = vmatprep.subr.mxu0 0.0
  %74 = vmatpush2.msra.mxu0 0.0
  %75 = vmatprep.subr.mxu0 0.0
  %76 = vmatpush2.msra.mxu0 0.0
  %77 = vmatprep.subr.mxu0 0.0
  %78 = vmatpush2.msra.mxu0 0.0
  %79 = vmatprep.subr.mxu0 0.0
  %80 = vmatpush2.msra.mxu0 0.0
  %81 = vmatprep.subr.mxu0 0.0
  %82 = vmatpush2.msra.mxu0 0.0
  %83 = vmatprep.subr.mxu0 0.0
  %84 = vmatpush2.msra.mxu0 0.0
  %85 = vmatprep.subr.mxu0 0.0
  %86 = vmatpush2.msra.mxu0 0.0
  %87 = vmatprep.subr.mxu0 0.0
  %88 = vmatpush2.msra.mxu0 0.0
  %89 = vmatprep.subr.mxu0 0.0
  %90 = vmatpush2.msra.mxu0 0.0
  %91 = vmatprep.subr.mxu0 0.0
  %92 = vmatpush2.msra.mxu0 0.0
  %93 = vmatprep.subr.mxu0 0.0
  %94 = vmatpush2.msra.mxu0 0.0
  %95 = vmatprep.subr.mxu0 0.0
  %96 = vmatpush2.msra.mxu0 0.0
  %97 = vmatprep.mubr.f32.mxu0 0.0
  %98 = vmatmul.mubr.f32.gmra.mxu0 %v26
  %v99 = vpop.f32.mrf.mxu0
  %v100 = vadd.f32 %v20, %v99
  %v101 = vpop.f32.mrf.mxu0
  %v102 = vadd.f32 %v20, %v101
  %103 = vdwg.mxu0
  %v106 = vcombine.low %v100, %v102
  %v108 = vunpack.c.l.s4 1983009808
  %v109 = vunpack.c.0.s8 %v108
  %v110 = vlaneseq
  %v111 = vshrl.u32 %v110, 7
  %v112 = vsub.s32 %v109, %v111
  %v113 = vrot.slane %v106, %v112
  %115 = vst [vmem:[%s3] sm:$0xf] %v113
  %s116 = scalar_lea.vmem %s0, 8
  %v117 = vld [vmem:[%s116] sm:$0xff]
  %v119 = vcombine.high %v117, %v117
  %v120 = vsel %vm28, %v117, 0
  %v122 = vsel %vm28, %v119, 0
  %124 = vmatprep.subr.mxu0 0.0
  %125 = vmatpush1.msra.mxu0 0.0
  %126 = vmatprep.subr.mxu0 0.0
  %127 = vmatpush1.msra.mxu0 0.0
  %128 = vmatprep.subr.mxu0 0.0
  %129 = vmatpush1.msra.mxu0 0.0
  %130 = vmatprep.subr.mxu0 0.0
  %131 = vmatpush1.msra.mxu0 0.0
  %132 = vmatprep.subr.mxu0 0.0
  %133 = vmatpush1.msra.mxu0 0.0
  %134 = vmatprep.subr.mxu0 0.0
  %135 = vmatpush1.msra.mxu0 0.0
  %136 = vmatprep.subr.mxu0 0.0
  %137 = vmatpush1.msra.mxu0 0.0
  %138 = vmatprep.subr.mxu0 0.0
  %139 = vmatpush1.msra.mxu0 0.0
  %140 = vmatprep.subr.mxu0 0.0
  %141 = vmatpush1.msra.mxu0 0.0
  %142 = vmatprep.subr.mxu0 0.0
  %143 = vmatpush1.msra.mxu0 0.0
  %144 = vmatprep.subr.mxu0 0.0
  %145 = vmatpush1.msra.mxu0 0.0
  %146 = vmatprep.subr.mxu0 0.0
  %147 = vmatpush1.msra.mxu0 0.0
  %148 = vmatprep.subr.mxu0 0.0
  %149 = vmatpush1.msra.mxu0 0.0
  %150 = vmatprep.subr.mxu0 0.0
  %151 = vmatpush1.msra.mxu0 0.0
  %152 = vmatprep.subr.mxu0 0.0
  %153 = vmatpush1.msra.mxu0 0.0
  %154 = vmatprep.subr.mxu0 %v122
  %155 = vmatpush1.msra.mxu0 %v120
  %156 = vmatprep.subr.mxu0 0.0
  %157 = vmatpush2.msra.mxu0 0.0
  %158 = vmatprep.subr.mxu0 0.0
  %159 = vmatpush2.msra.mxu0 0.0
  %160 = vmatprep.subr.mxu0 0.0
  %161 = vmatpush2.msra.mxu0 0.0
  %162 = vmatprep.subr.mxu0 0.0
  %163 = vmatpush2.msra.mxu0 0.0
  %164 = vmatprep.subr.mxu0 0.0
  %165 = vmatpush2.msra.mxu0 0.0
  %166 = vmatprep.subr.mxu0 0.0
  %167 = vmatpush2.msra.mxu0 0.0
  %168 = vmatprep.subr.mxu0 0.0
  %169 = vmatpush2.msra.mxu0 0.0
  %170 = vmatprep.subr.mxu0 0.0
  %171 = vmatpush2.msra.mxu0 0.0
  %172 = vmatprep.subr.mxu0 0.0
  %173 = vmatpush2.msra.mxu0 0.0
  %174 = vmatprep.subr.mxu0 0.0
  %175 = vmatpush2.msra.mxu0 0.0
  %176 = vmatprep.subr.mxu0 0.0
  %177 = vmatpush2.msra.mxu0 0.0
  %178 = vmatprep.subr.mxu0 0.0
  %179 = vmatpush2.msra.mxu0 0.0
  %180 = vmatprep.subr.mxu0 0.0
  %181 = vmatpush2.msra.mxu0 0.0
  %182 = vmatprep.subr.mxu0 0.0
  %183 = vmatpush2.msra.mxu0 0.0
  %184 = vmatprep.subr.mxu0 0.0
  %185 = vmatpush2.msra.mxu0 0.0
  %186 = vmatprep.subr.mxu0 0.0
  %187 = vmatpush2.msra.mxu0 0.0
  %188 = vmatprep.mubr.f32.mxu0 0.0
  %189 = vmatmul.mubr.f32.gmra.mxu0 %v26
  %v190 = vpop.f32.mrf.mxu0
  %v191 = vadd.f32 %v20, %v190
  %v192 = vpop.f32.mrf.mxu0
  %v193 = vadd.f32 %v20, %v192
  %194 = vdwg.mxu0
  %v197 = vcombine.low %v191, %v193
  %v199 = vunpack.c.l.s4 1983009808
  %v200 = vunpack.c.0.s8 %v199
  %v201 = vlaneseq
  %v202 = vshrl.u32 %v201, 7
  %v203 = vsub.s32 %v200, %v202
  %v204 = vrot.slane %v197, %v203
  %s206 = scalar_lea.vmem %s3, 4
  %207 = vst [vmem:[%s206] sm:$0xf] %v204
  // Predicated region
  $region14: #{output_layer_conv.1} parent=0 // pred_check
    _
  $region15: #{output_layer_conv.1} parent=0 // pred_check_branch
    %209 = sbr.rel (0) target = $region17
  $region16: #{output_layer_conv.1} parent=0 // pred_region
    _
  $region17: #{output_layer_conv.1} parent=0 // pred_fallthru
    _
  // Predicated region
  $region18: #{output_layer_conv.1} parent=0 // pred_check
    _
  $region19: #{output_layer_conv.1} parent=0 // pred_check_branch
    %211 = sbr.rel (0) target = $region21
  $region20: #{output_layer_conv.1} parent=0 // pred_region
    _
  $region21: #{output_layer_conv.1} parent=0 // pred_fallthru
    _

</llo_original>
